<compile_context>
chip_gen: v5e
topology: v5e:2x2
jax: 0.10.0
libtpu: 0.0.40
codegen_flags: <defaults>
</compile_context>

<pallas_src>
import jax
import jax.numpy as jnp
from jax import lax
from jax.experimental import pallas as pl
from jax.experimental.pallas import tpu as pltpu

# ----------------------------- model config ---------------------------------
IMG_CHANNELS = 3          # BaseModel.img_channels
IMG_H = 16                # small spatial size (module default 224, scaled down)
IMG_W = 16
BATCH = 2
NUM_QUERIES = 8           # detector queries
NUM_CLASSES = 4           # foreground classes; logits dim = NUM_CLASSES + 1
FEAT_DIM = IMG_CHANNELS * IMG_H * IMG_W          # 768
CLS_OUT = NUM_QUERIES * (NUM_CLASSES + 1)        # 40
BOX_OUT = NUM_QUERIES * 4                        # 32
HEAD_OUT = CLS_OUT + BOX_OUT                     # 72 real output columns
LANE = 128
OUT_PAD = LANE                                   # lane-dense padded output width
TM = 8                                           # rows per grid step (>= f32 sublanes)


# ------------------------------ Pallas kernel --------------------------------
def fused_head_kernel(x_ref, w_ref, b_ref, out_ref):
    """Fused detection head: one GEMM, bias, selective sigmoid, dense store.

    x_ref  : [TM, D]        bf16 flattened image rows (zero-padded batch)
    w_ref  : [D, 128]       bf16 fused weight  (w_cls | w_box | zero pad)
    b_ref  : [1, 128]       f32  fused bias    (b_cls | b_box | zero pad)
    out_ref: [TM, 128]      f32  cols [0,40) = logits, [40,72) = sigmoid boxes
    """
    # bf16 x bf16 -> f32 accumulate on the MXU.
    y = jnp.dot(x_ref[...], w_ref[...], preferred_element_type=jnp.float32)
    y = y + b_ref[...]

    # Apply sigmoid only to the box columns, selected with a lane iota mask.
    col = lax.broadcasted_iota(jnp.int32, y.shape, 1)
    is_box = (col >= CLS_OUT) & (col < HEAD_OUT)
    out_ref[...] = jnp.where(is_box, jax.nn.sigmoid(y), y)


def detector_head(x_pad, w_fused, b_fused):
    """x_pad: [M, D] bf16 with M a multiple of TM. Returns [M, 128] f32."""
    M, D = x_pad.shape
    return pl.pallas_call(
        fused_head_kernel,
        out_shape=jax.ShapeDtypeStruct((M, OUT_PAD), jnp.float32),
        grid=(M // TM,),
        in_specs=[
            pl.BlockSpec((TM, D), lambda i: (i, 0)),        # batch-row tile
            pl.BlockSpec((D, OUT_PAD), lambda i: (0, 0)),   # resident weights
            pl.BlockSpec((1, OUT_PAD), lambda i: (0, 0)),   # resident bias
        ],
        out_specs=pl.BlockSpec((TM, OUT_PAD), lambda i: (i, 0)),
        compiler_params=pltpu.CompilerParams(
            dimension_semantics=("parallel",)),              # megacore split on v7x
    )(x_pad, w_fused, b_fused)


# ------------------------------ BaseModel forward -----------------------------
def base_model_forward(img, params):
    """Mirrors BaseModel.forward:
        x = img; feats = img
        out_det = detector(x, feats)
        bbox_pred, cls_pred = postprocess(out_det)
        return {'pred_logits': cls_pred, 'pred_boxes': bbox_pred}
    """
    B = img.shape[0]
    # glue: flatten NCHW -> [B, C*H*W]  (detector.get_inputs equivalent)
    x_flat = img.reshape(B, -1)

    # Pad batch rows to a multiple of TM (sublane-aligned) and cast to bf16.
    M = ((B + TM - 1) // TM) * TM
    x_pad = jnp.zeros((M, FEAT_DIM), jnp.bfloat16).at[:B].set(
        x_flat.astype(jnp.bfloat16))

    out = detector_head(x_pad, params["w_fused"], params["b_fused"])

    pred_logits = out[:B, :CLS_OUT].reshape(B, NUM_QUERIES, NUM_CLASSES + 1)
    pred_boxes = out[:B, CLS_OUT:HEAD_OUT].reshape(B, NUM_QUERIES, 4)
    return {"pred_logits": pred_logits, "pred_boxes": pred_boxes}


def init_params(key):
    k1, k2, k3, k4 = jax.random.split(key, 4)
    scale = 1.0 / jnp.sqrt(jnp.float32(FEAT_DIM))
    w_cls = jax.random.normal(k1, (FEAT_DIM, CLS_OUT), jnp.float32) * scale
    b_cls = jax.random.normal(k2, (CLS_OUT,), jnp.float32) * 0.01
    w_box = jax.random.normal(k3, (FEAT_DIM, BOX_OUT), jnp.float32) * scale
    b_box = jax.random.normal(k4, (BOX_OUT,), jnp.float32) * 0.01

    # Fuse the two heads along the output axis and pad to 128 lanes.
    w = jnp.concatenate([w_cls, w_box], axis=1)                 # [D, 72]
    w_fused = jnp.pad(w, ((0, 0), (0, OUT_PAD - HEAD_OUT))).astype(jnp.bfloat16)
    b = jnp.concatenate([b_cls, b_box])                         # [72]
    b_fused = jnp.pad(b, (0, OUT_PAD - HEAD_OUT)).reshape(1, OUT_PAD)

    return {
        "w_fused": w_fused, "b_fused": b_fused,
        # f32 originals kept only for the reference check in __main__
        "w_cls": w_cls, "b_cls": b_cls, "w_box": w_box, "b_box": b_box,
    }


if __name__ == "__main__":
    key = jax.random.PRNGKey(0)
    k_img, k_param = jax.random.split(key)

    # deterministic synthetic image, NCHW
    img = jax.random.normal(k_img, (BATCH, IMG_CHANNELS, IMG_H, IMG_W), jnp.float32)
    params = init_params(k_param)

    out = jax.jit(base_model_forward)(img, params)
    jax.block_until_ready(out)

    # Reference check against plain JAX using the same bf16-rounded operands
    # (MXU consumes bf16 with f32 accumulation).
    x_flat = img.reshape(BATCH, -1)
    x_bf = x_flat.astype(jnp.bfloat16).astype(jnp.float32)
    wc = params["w_cls"].astype(jnp.bfloat16).astype(jnp.float32)
    wb = params["w_box"].astype(jnp.bfloat16).astype(jnp.float32)
    ref_logits = (x_bf @ wc + params["b_cls"]).reshape(
        BATCH, NUM_QUERIES, NUM_CLASSES + 1)
    ref_boxes = jax.nn.sigmoid(x_bf @ wb + params["b_box"]).reshape(
        BATCH, NUM_QUERIES, 4)

    assert jnp.allclose(out["pred_logits"], ref_logits, atol=2e-3, rtol=2e-3)
    assert jnp.allclose(out["pred_boxes"], ref_boxes, atol=2e-3, rtol=2e-3)
    assert out["pred_logits"].shape == (BATCH, NUM_QUERIES, NUM_CLASSES + 1)
    assert out["pred_boxes"].shape == (BATCH, NUM_QUERIES, 4)

    print("KERNEL_OK")
</pallas_src>

<mosaic_0001>
module attributes {stable_mosaic.version = 11 : i64} {
  func.func @fused_head_kernel(%arg0: i32, %arg1: memref<8x768xbf16, #tpu.memory_space<vmem>>, %arg2: memref<768x128xbf16, #tpu.memory_space<vmem>>, %arg3: memref<1x128xf32, #tpu.memory_space<vmem>>, %arg4: memref<8x128xf32, #tpu.memory_space<vmem>>) attributes {dimension_semantics = [#tpu.dimension_semantics<parallel>], iteration_bounds = array<i64: 1>, scalar_prefetch = 0 : i64, scratch_operands = 0 : i64, tpu.core_type = #tpu.core_type<tc>, window_params = [{transform_indices = @transform_0, window_bounds = array<i64: 8, 768>}, {pipeline_mode = #tpu.pipeline_mode<synchronous>, transform_indices = @transform_1, window_bounds = array<i64: 768, 128>}, {pipeline_mode = #tpu.pipeline_mode<synchronous>, transform_indices = @transform_2, window_bounds = array<i64: 1, 128>}, {transform_indices = @transform_3, window_bounds = array<i64: 8, 128>}]} {
    %c0 = arith.constant 0 : index
    %c0_0 = arith.constant 0 : index
    %0 = vector.load %arg1[%c0, %c0_0] : memref<8x768xbf16, #tpu.memory_space<vmem>>, vector<8x768xbf16>
    %c0_1 = arith.constant 0 : index
    %c0_2 = arith.constant 0 : index
    %1 = vector.load %arg2[%c0_1, %c0_2] : memref<768x128xbf16, #tpu.memory_space<vmem>>, vector<768x128xbf16>
    %cst = arith.constant dense<0.000000e+00> : vector<8x128xf32>
    %2 = tpu.matmul %0, %1, %cst {dimension_numbers = #tpu.dot_dimension_numbers<[1], [0], [0], [1], [0, 0, 1, 1], [], []>} : vector<8x768xbf16>, vector<768x128xbf16>, vector<8x128xf32> -> vector<8x128xf32>
    %c0_3 = arith.constant 0 : index
    %c0_4 = arith.constant 0 : index
    %3 = vector.load %arg3[%c0_3, %c0_4] : memref<1x128xf32, #tpu.memory_space<vmem>>, vector<1x128xf32>
    %4 = vector.broadcast %3 : vector<1x128xf32> to vector<8x128xf32>
    %5 = arith.addf %2, %4 : vector<8x128xf32>
    %6 = tpu.iota {dimensions = array<i32: 1>} : vector<8x128xi32>
    %c40_i32 = arith.constant 40 : i32
    %7 = vector.broadcast %c40_i32 : i32 to vector<8x128xi32>
    %8 = arith.cmpi sge, %6, %7 : vector<8x128xi32>
    %c72_i32 = arith.constant 72 : i32
    %9 = vector.broadcast %c72_i32 : i32 to vector<8x128xi32>
    %10 = arith.cmpi slt, %6, %9 : vector<8x128xi32>
    %11 = arith.andi %8, %10 : vector<8x128xi1>
    %12 = arith.negf %5 : vector<8x128xf32>
    %13 = math.exp %12 : vector<8x128xf32>
    %cst_5 = arith.constant 1.000000e+00 : f32
    %14 = vector.broadcast %cst_5 : f32 to vector<8x128xf32>
    %15 = arith.addf %14, %13 : vector<8x128xf32>
    %16 = arith.divf %14, %15 : vector<8x128xf32>
    %17 = arith.select %11, %16, %5 : vector<8x128xi1>, vector<8x128xf32>
    %c0_6 = arith.constant 0 : index
    %c0_7 = arith.constant 0 : index
    %18 = vector.load %arg4[%c0_6, %c0_7] : memref<8x128xf32, #tpu.memory_space<vmem>>, vector<8x128xf32>
    tpu.vector_store %arg4[%c0_6, %c0_7], %17 {strides = array<i32>} : memref<8x128xf32, #tpu.memory_space<vmem>>, vector<8x128xf32>,
    return
  }
  func.func @transform_0(%arg0: i32) -> (i32, i32) {
    %c0_i32 = arith.constant 0 : i32
    %c0_i32_0 = arith.constant 0 : i32
    return %arg0, %c0_i32 : i32, i32
  }
  func.func @transform_1(%arg0: i32) -> (i32, i32) {
    %c0_i32 = arith.constant 0 : i32
    %c0_i32_0 = arith.constant 0 : i32
    %c0_i32_1 = arith.constant 0 : i32
    return %c0_i32, %c0_i32_0 : i32, i32
  }
  func.func @transform_2(%arg0: i32) -> (i32, i32) {
    %c0_i32 = arith.constant 0 : i32
    %c0_i32_0 = arith.constant 0 : i32
    %c0_i32_1 = arith.constant 0 : i32
    return %c0_i32, %c0_i32_0 : i32, i32
  }
  func.func @transform_3(%arg0: i32) -> (i32, i32) {
    %c0_i32 = arith.constant 0 : i32
    %c0_i32_0 = arith.constant 0 : i32
    return %arg0, %c0_i32 : i32, i32
  }
}

</mosaic_0001>

<llo_original>
// kernel: base_model_forward.1
$region0: #{base_model_forward.1}
  #allocation0 [shape = 'u32[]', space=smem, size = 0x4, offset = 0x4, fixed_abs, tag = 'smem constant byte address 0x4 - core index']
  #allocation1 [shape = 'u32[72,128]{1,0:T(1,128)}', space=vmem, size = 0x9000, scoped, tag = 'internal scratch']
  %s0 = inlined_call_operand.vmem [shape: bf16[8,768], index: 0, kind: input, shape index: {}]
  %s1 = inlined_call_operand.hbm [shape: bf16[768,128], index: 1, kind: input, shape index: {}]
  %s2 = inlined_call_operand.vmem [shape: f32[1,128], index: 2, kind: input, shape index: {}]
  %s3 = inlined_call_operand.vmem [shape: f32[8,128], index: 3, kind: output, shape index: {}]
  %s4 = sld [smem:[#allocation0]]
  $region26: #{base_model_forward.1} parent=0
    _
  %s6 = ssub.s32 1, %s4
  %s7 = scalar_select 0, %s6, %s4
  $region1: #{base_model_forward.1} parent=0
    #allocation2 [shape = 'u8[196608]{0}', space=vmem, size = 0x30000, scoped, tag = 'input window, operand 1, single buffered']
    #allocation3 [shape = 's32[1]{0}', space=sflag, size = 0x4, scoped, tag = 'scoped memory for base_model_forward.1']
    %8 = vsyncpa [#allocation3], 0
    // Predicated region
    $region2: #{base_model_forward.1} parent=1 // pred_check
      _
    $region3: #{base_model_forward.1} parent=1 // pred_check_branch
      %10 = sbr.rel (0) target = $region5
    $region4: #{base_model_forward.1} parent=1 // pred_region
      _
    $region5: #{base_model_forward.1} parent=1 // pred_fallthru
      _
    // Predicated region
    $region6: #{base_model_forward.1} parent=1 // pred_check
      _
    $region7: #{base_model_forward.1} parent=1 // pred_check_branch
      %12 = sbr.rel (0) target = $region9
    $region8: #{base_model_forward.1} parent=1 // pred_region
      %14 = vsyncadd [#allocation3], 0
      %s15 = sshll.u32 %s1, 4
      %s16 = int_to_ptr.hbm [resolvable:$true] %s15
      %s17 = sshll.u32 [#allocation2], 4
      %s18 = int_to_ptr.vmem [resolvable:$true] %s17
      %23 = dma.hbm_to_vmem [thread:$0]  %s16, 6144, %s18, [#allocation3], 64, 64, 4
    $region9: #{base_model_forward.1} parent=1 // pred_fallthru
      _
    // Predicated region
    $region10: #{base_model_forward.1} parent=1 // pred_check
      _
    $region11: #{base_model_forward.1} parent=1 // pred_check_branch
      %25 = sbr.rel (0) target = $region13
    $region12: #{base_model_forward.1} parent=1 // pred_region
      _
    $region13: #{base_model_forward.1} parent=1 // pred_fallthru
      _
    // Predicated region
    $region14: #{base_model_forward.1} parent=1 // pred_check
      _
    $region15: #{base_model_forward.1} parent=1 // pred_check_branch
      %27 = sbr.rel (0) target = $region17
    $region16: #{base_model_forward.1} parent=1 // pred_region
      %29 = dma.done [#allocation3], 6144
    $region17: #{base_model_forward.1} parent=1 // pred_fallthru
      _
    %v30 = vld [vmem:[%s0] sm:$0xff]
    %v31 = vld [vmem:[%s0 + $0x8] sm:$0xff]
    %v32 = vld [vmem:[%s0 + $0x10] sm:$0xff]
    %v33 = vld [vmem:[#allocation2] sm:$0xf]
    %v34 = vld [vmem:[#allocation2 + $0x4] sm:$0xf]
    %v35 = vld [vmem:[#allocation2 + $0x8] sm:$0xf]
    %v36 = vld [vmem:[#allocation2 + $0xc] sm:$0xf]
    %v37 = vld [vmem:[#allocation2 + $0x10] sm:$0xf]
    %v38 = vld [vmem:[#allocation2 + $0x14] sm:$0xf]
    %v39 = vld [vmem:[#allocation2 + $0x18] sm:$0xf]
    %v40 = vld [vmem:[#allocation2 + $0x1c] sm:$0xf]
    %v41 = vld [vmem:[#allocation2 + $0x20] sm:$0xf]
    %v42 = vld [vmem:[#allocation2 + $0x24] sm:$0xf]
    %v43 = vld [vmem:[#allocation2 + $0x28] sm:$0xf]
    %v44 = vld [vmem:[#allocation2 + $0x2c] sm:$0xf]
    %v45 = vld [vmem:[#allocation2 + $0x30] sm:$0xf]
    %v46 = vld [vmem:[#allocation2 + $0x34] sm:$0xf]
    %v47 = vld [vmem:[#allocation2 + $0x38] sm:$0xf]
    %v48 = vld [vmem:[#allocation2 + $0x3c] sm:$0xf]
    %v49 = vld [vmem:[#allocation2 + $0x40] sm:$0xf]
    %v50 = vld [vmem:[#allocation2 + $0x44] sm:$0xf]
    %v51 = vld [vmem:[#allocation2 + $0x48] sm:$0xf]
    %v52 = vld [vmem:[#allocation2 + $0x4c] sm:$0xf]
    %v53 = vld [vmem:[#allocation2 + $0x50] sm:$0xf]
    %v54 = vld [vmem:[#allocation2 + $0x54] sm:$0xf]
    %v55 = vld [vmem:[#allocation2 + $0x58] sm:$0xf]
    %v56 = vld [vmem:[#allocation2 + $0x5c] sm:$0xf]
    %v57 = vld [vmem:[#allocation2 + $0x60] sm:$0xf]
    %v58 = vld [vmem:[#allocation2 + $0x64] sm:$0xf]
    %v59 = vld [vmem:[#allocation2 + $0x68] sm:$0xf]
    %v60 = vld [vmem:[#allocation2 + $0x6c] sm:$0xf]
    %v61 = vld [vmem:[#allocation2 + $0x70] sm:$0xf]
    %v62 = vld [vmem:[#allocation2 + $0x74] sm:$0xf]
    %v63 = vld [vmem:[#allocation2 + $0x78] sm:$0xf]
    %v64 = vld [vmem:[#allocation2 + $0x7c] sm:$0xf]
    %v65 = vld [vmem:[#allocation2 + $0x80] sm:$0xf]
    %v66 = vld [vmem:[#allocation2 + $0x84] sm:$0xf]
    %v67 = vld [vmem:[#allocation2 + $0x88] sm:$0xf]
    %v68 = vld [vmem:[#allocation2 + $0x8c] sm:$0xf]
    %v69 = vld [vmem:[#allocation2 + $0x90] sm:$0xf]
    %v70 = vld [vmem:[#allocation2 + $0x94] sm:$0xf]
    %v71 = vld [vmem:[#allocation2 + $0x98] sm:$0xf]
    %v72 = vld [vmem:[#allocation2 + $0x9c] sm:$0xf]
    %v73 = vld [vmem:[#allocation2 + $0xa0] sm:$0xf]
    %v74 = vld [vmem:[#allocation2 + $0xa4] sm:$0xf]
    %v75 = vld [vmem:[#allocation2 + $0xa8] sm:$0xf]
    %v76 = vld [vmem:[#allocation2 + $0xac] sm:$0xf]
    %v77 = vld [vmem:[#allocation2 + $0xb0] sm:$0xf]
    %v78 = vld [vmem:[#allocation2 + $0xb4] sm:$0xf]
    %v79 = vld [vmem:[#allocation2 + $0xb8] sm:$0xf]
    %v80 = vld [vmem:[#allocation2 + $0xbc] sm:$0xf]
    %v81 = vld [vmem:[#allocation2 + $0xc0] sm:$0xf]
    %v82 = vld [vmem:[#allocation2 + $0xc4] sm:$0xf]
    %v83 = vld [vmem:[#allocation2 + $0xc8] sm:$0xf]
    %v84 = vld [vmem:[#allocation2 + $0xcc] sm:$0xf]
    %v85 = vld [vmem:[#allocation2 + $0xd0] sm:$0xf]
    %v86 = vld [vmem:[#allocation2 + $0xd4] sm:$0xf]
    %v87 = vld [vmem:[#allocation2 + $0xd8] sm:$0xf]
    %v88 = vld [vmem:[#allocation2 + $0xdc] sm:$0xf]
    %v89 = vld [vmem:[#allocation2 + $0xe0] sm:$0xf]
    %v90 = vld [vmem:[#allocation2 + $0xe4] sm:$0xf]
    %v91 = vld [vmem:[#allocation2 + $0xe8] sm:$0xf]
    %v92 = vld [vmem:[#allocation2 + $0xec] sm:$0xf]
    %v93 = vld [vmem:[#allocation2 + $0xf0] sm:$0xf]
    %v94 = vld [vmem:[#allocation2 + $0xf4] sm:$0xf]
    %v95 = vld [vmem:[#allocation2 + $0xf8] sm:$0xf]
    %v96 = vld [vmem:[#allocation2 + $0xfc] sm:$0xf]
    %v97 = vld [vmem:[#allocation2 + $0x100] sm:$0xf]
    %v98 = vld [vmem:[#allocation2 + $0x104] sm:$0xf]
    %v99 = vld [vmem:[#allocation2 + $0x108] sm:$0xf]
    %v100 = vld [vmem:[#allocation2 + $0x10c] sm:$0xf]
    %v101 = vld [vmem:[#allocation2 + $0x110] sm:$0xf]
    %v102 = vld [vmem:[#allocation2 + $0x114] sm:$0xf]
    %v103 = vld [vmem:[#allocation2 + $0x118] sm:$0xf]
    %v104 = vld [vmem:[#allocation2 + $0x11c] sm:$0xf]
    %v105 = vld [vmem:[#allocation2 + $0x120] sm:$0xf]
    %v106 = vld [vmem:[#allocation2 + $0x124] sm:$0xf]
    %v107 = vld [vmem:[#allocation2 + $0x128] sm:$0xf]
    %v108 = vld [vmem:[#allocation2 + $0x12c] sm:$0xf]
    %v109 = vld [vmem:[#allocation2 + $0x130] sm:$0xf]
    %v110 = vld [vmem:[#allocation2 + $0x134] sm:$0xf]
    %v111 = vld [vmem:[#allocation2 + $0x138] sm:$0xf]
    %v112 = vld [vmem:[#allocation2 + $0x13c] sm:$0xf]
    %v113 = vld [vmem:[#allocation2 + $0x140] sm:$0xf]
    %v114 = vld [vmem:[#allocation2 + $0x144] sm:$0xf]
    %v115 = vld [vmem:[#allocation2 + $0x148] sm:$0xf]
    %v116 = vld [vmem:[#allocation2 + $0x14c] sm:$0xf]
    %v117 = vld [vmem:[#allocation2 + $0x150] sm:$0xf]
    %v118 = vld [vmem:[#allocation2 + $0x154] sm:$0xf]
    %v119 = vld [vmem:[#allocation2 + $0x158] sm:$0xf]
    %v120 = vld [vmem:[#allocation2 + $0x15c] sm:$0xf]
    %v121 = vld [vmem:[#allocation2 + $0x160] sm:$0xf]
    %v122 = vld [vmem:[#allocation2 + $0x164] sm:$0xf]
    %v123 = vld [vmem:[#allocation2 + $0x168] sm:$0xf]
    %v124 = vld [vmem:[#allocation2 + $0x16c] sm:$0xf]
    %v125 = vld [vmem:[#allocation2 + $0x170] sm:$0xf]
    %v126 = vld [vmem:[#allocation2 + $0x174] sm:$0xf]
    %v127 = vld [vmem:[#allocation2 + $0x178] sm:$0xf]
    %v128 = vld [vmem:[#allocation2 + $0x17c] sm:$0xf]
    %v129 = vld [vmem:[%s2] sm:$0x1]
    %v131 = vperm.slane %v129, 0
    %v136 = vunpack.c.l.b16 %v30
    %v137 = vunpack.c.h.b16 %v30
    %v138 = vunpack.c.l.b16 %v31
    %v139 = vunpack.c.h.b16 %v31
    %v140 = vunpack.c.l.b16 %v32
    %v141 = vunpack.c.h.b16 %v32
    %v142 = vpack.c.b16 %v136, %v136
    %v143 = vpack.c.b16 %v137, %v137
    %v144 = vpack.c.b16 %v138, %v138
    %v145 = vpack.c.b16 %v139, %v139
    %v146 = vpack.c.b16 %v140, %v140
    %v147 = vpack.c.b16 %v141, %v141
    %v250 = vunpack.c.l.b16 %v33
    %v251 = vunpack.c.l.b16 %v34
    %v252 = vunpack.c.l.b16 %v35
    %v253 = vunpack.c.l.b16 %v36
    %v254 = vunpack.c.l.b16 %v37
    %v255 = vunpack.c.l.b16 %v38
    %v256 = vunpack.c.l.b16 %v39
    %v257 = vunpack.c.l.b16 %v40
    %v258 = vunpack.c.l.b16 %v41
    %v259 = vunpack.c.l.b16 %v42
    %v260 = vunpack.c.l.b16 %v43
    %v261 = vunpack.c.l.b16 %v44
    %v262 = vunpack.c.l.b16 %v45
    %v263 = vunpack.c.l.b16 %v46
    %v264 = vunpack.c.l.b16 %v47
    %v265 = vunpack.c.l.b16 %v48
    %v266 = vunpack.c.l.b16 %v49
    %v267 = vunpack.c.l.b16 %v50
    %v268 = vunpack.c.l.b16 %v51
    %v269 = vunpack.c.l.b16 %v52
    %v270 = vunpack.c.l.b16 %v53
    %v271 = vunpack.c.l.b16 %v54
    %v272 = vunpack.c.l.b16 %v55
    %v273 = vunpack.c.l.b16 %v56
    %v274 = vunpack.c.l.b16 %v57
    %v275 = vunpack.c.l.b16 %v58
    %v276 = vunpack.c.l.b16 %v59
    %v277 = vunpack.c.l.b16 %v60
    %v278 = vunpack.c.l.b16 %v61
    %v279 = vunpack.c.l.b16 %v62
    %v280 = vunpack.c.l.b16 %v63
    %v281 = vunpack.c.l.b16 %v64
    %v282 = vunpack.c.l.b16 %v65
    %v283 = vunpack.c.l.b16 %v66
    %v284 = vunpack.c.l.b16 %v67
    %v285 = vunpack.c.l.b16 %v68
    %v286 = vunpack.c.l.b16 %v69
    %v287 = vunpack.c.l.b16 %v70
    %v288 = vunpack.c.l.b16 %v71
    %v289 = vunpack.c.l.b16 %v72
    %v290 = vunpack.c.l.b16 %v73
    %v291 = vunpack.c.l.b16 %v74
    %v292 = vunpack.c.l.b16 %v75
    %v293 = vunpack.c.l.b16 %v76
    %v294 = vunpack.c.l.b16 %v77
    %v295 = vunpack.c.l.b16 %v78
    %v296 = vunpack.c.l.b16 %v79
    %v297 = vunpack.c.l.b16 %v80
    %v298 = vunpack.c.l.b16 %v81
    %v299 = vunpack.c.l.b16 %v82
    %v300 = vunpack.c.l.b16 %v83
    %v301 = vunpack.c.l.b16 %v84
    %v302 = vunpack.c.l.b16 %v85
    %v303 = vunpack.c.l.b16 %v86
    %v304 = vunpack.c.l.b16 %v87
    %v305 = vunpack.c.l.b16 %v88
    %v306 = vunpack.c.l.b16 %v89
    %v307 = vunpack.c.l.b16 %v90
    %v308 = vunpack.c.l.b16 %v91
    %v309 = vunpack.c.l.b16 %v92
    %v310 = vunpack.c.l.b16 %v93
    %v311 = vunpack.c.l.b16 %v94
    %v312 = vunpack.c.l.b16 %v95
    %v313 = vunpack.c.l.b16 %v96
    %v314 = vunpack.c.l.b16 %v97
    %v315 = vunpack.c.l.b16 %v98
    %v316 = vunpack.c.l.b16 %v99
    %v317 = vunpack.c.l.b16 %v100
    %v318 = vunpack.c.l.b16 %v101
    %v319 = vunpack.c.l.b16 %v102
    %v320 = vunpack.c.l.b16 %v103
    %v321 = vunpack.c.l.b16 %v104
    %v322 = vunpack.c.l.b16 %v105
    %v323 = vunpack.c.l.b16 %v106
    %v324 = vunpack.c.l.b16 %v107
    %v325 = vunpack.c.l.b16 %v108
    %v326 = vunpack.c.l.b16 %v109
    %v327 = vunpack.c.l.b16 %v110
    %v328 = vunpack.c.l.b16 %v111
    %v329 = vunpack.c.l.b16 %v112
    %v330 = vunpack.c.l.b16 %v113
    %v331 = vunpack.c.l.b16 %v114
    %v332 = vunpack.c.l.b16 %v115
    %v333 = vunpack.c.l.b16 %v116
    %v334 = vunpack.c.l.b16 %v117
    %v335 = vunpack.c.l.b16 %v118
    %v336 = vunpack.c.l.b16 %v119
    %v337 = vunpack.c.l.b16 %v120
    %v338 = vunpack.c.l.b16 %v121
    %v339 = vunpack.c.l.b16 %v122
    %v340 = vunpack.c.l.b16 %v123
    %v341 = vunpack.c.l.b16 %v124
    %v342 = vunpack.c.l.b16 %v125
    %v343 = vunpack.c.l.b16 %v126
    %v344 = vunpack.c.l.b16 %v127
    %v345 = vunpack.c.l.b16 %v128
    %v346 = vpack.c.b16 %v251, %v250
    %v347 = vpack.c.b16 %v253, %v252
    %v348 = vpack.c.b16 %v255, %v254
    %v349 = vpack.c.b16 %v257, %v256
    %v350 = vpack.c.b16 %v259, %v258
    %v351 = vpack.c.b16 %v261, %v260
    %v352 = vpack.c.b16 %v263, %v262
    %v353 = vpack.c.b16 %v265, %v264
    %v354 = vpack.c.b16 %v267, %v266
    %v355 = vpack.c.b16 %v269, %v268
    %v356 = vpack.c.b16 %v271, %v270
    %v357 = vpack.c.b16 %v273, %v272
    %v358 = vpack.c.b16 %v275, %v274
    %v359 = vpack.c.b16 %v277, %v276
    %v360 = vpack.c.b16 %v279, %v278
    %v361 = vpack.c.b16 %v281, %v280
    %v362 = vpack.c.b16 %v283, %v282
    %v363 = vpack.c.b16 %v285, %v284
    %v364 = vpack.c.b16 %v287, %v286
    %v365 = vpack.c.b16 %v289, %v288
    %v366 = vpack.c.b16 %v291, %v290
    %v367 = vpack.c.b16 %v293, %v292
    %v368 = vpack.c.b16 %v295, %v294
    %v369 = vpack.c.b16 %v297, %v296
    %v370 = vpack.c.b16 %v299, %v298
    %v371 = vpack.c.b16 %v301, %v300
    %v372 = vpack.c.b16 %v303, %v302
    %v373 = vpack.c.b16 %v305, %v304
    %v374 = vpack.c.b16 %v307, %v306
    %v375 = vpack.c.b16 %v309, %v308
    %v376 = vpack.c.b16 %v311, %v310
    %v377 = vpack.c.b16 %v313, %v312
    %v378 = vpack.c.b16 %v315, %v314
    %v379 = vpack.c.b16 %v317, %v316
    %v380 = vpack.c.b16 %v319, %v318
    %v381 = vpack.c.b16 %v321, %v320
    %v382 = vpack.c.b16 %v323, %v322
    %v383 = vpack.c.b16 %v325, %v324
    %v384 = vpack.c.b16 %v327, %v326
    %v385 = vpack.c.b16 %v329, %v328
    %v386 = vpack.c.b16 %v331, %v330
    %v387 = vpack.c.b16 %v333, %v332
    %v388 = vpack.c.b16 %v335, %v334
    %v389 = vpack.c.b16 %v337, %v336
    %v390 = vpack.c.b16 %v339, %v338
    %v391 = vpack.c.b16 %v341, %v340
    %v392 = vpack.c.b16 %v343, %v342
    %v393 = vpack.c.b16 %v345, %v344
    %442 = vmatpush.bf16.msra.mxu0 %v353
    %443 = vmatpush.bf16.msra.mxu0 %v352
    %444 = vmatpush.bf16.msra.mxu0 %v351
    %445 = vmatpush.bf16.msra.mxu0 %v350
    %446 = vmatpush.bf16.msra.mxu0 %v349
    %447 = vmatpush.bf16.msra.mxu0 %v348
    %448 = vmatpush.bf16.msra.mxu0 %v347
    %449 = vmatpush.bf16.msra.mxu0 %v346
    %450 = vmatmul.bf16.gmra.mxu0 %v142
    %v451 = vpop.f32.mrf.mxu0
    %v452 = vadd.f32 %v131, %v451
    %v453 = vpop.f32.mrf.mxu0
    %454 = vdwg.mxu0
    %455 = vmatpush.bf16.msra.mxu0 %v361
    %456 = vmatpush.bf16.msra.mxu0 %v360
    %457 = vmatpush.bf16.msra.mxu0 %v359
    %458 = vmatpush.bf16.msra.mxu0 %v358
    %459 = vmatpush.bf16.msra.mxu0 %v357
    %460 = vmatpush.bf16.msra.mxu0 %v356
    %461 = vmatpush.bf16.msra.mxu0 %v355
    %462 = vmatpush.bf16.msra.mxu0 %v354
    %463 = vmatmul.bf16.gmra.mxu0 %v143
    %v464 = vpop.f32.mrf.mxu0
    %v465 = vadd.f32 %v452, %v464
    %v466 = vpop.f32.mrf.mxu0
    %467 = vdwg.mxu0
    %468 = vmatpush.bf16.msra.mxu0 %v369
    %469 = vmatpush.bf16.msra.mxu0 %v368
    %470 = vmatpush.bf16.msra.mxu0 %v367
    %471 = vmatpush.bf16.msra.mxu0 %v366
    %472 = vmatpush.bf16.msra.mxu0 %v365
    %473 = vmatpush.bf16.msra.mxu0 %v364
    %474 = vmatpush.bf16.msra.mxu0 %v363
    %475 = vmatpush.bf16.msra.mxu0 %v362
    %476 = vmatmul.bf16.gmra.mxu0 %v144
    %v477 = vpop.f32.mrf.mxu0
    %v478 = vadd.f32 %v465, %v477
    %v479 = vpop.f32.mrf.mxu0
    %480 = vdwg.mxu0
    %481 = vmatpush.bf16.msra.mxu0 %v377
    %482 = vmatpush.bf16.msra.mxu0 %v376
    %483 = vmatpush.bf16.msra.mxu0 %v375
    %484 = vmatpush.bf16.msra.mxu0 %v374
    %485 = vmatpush.bf16.msra.mxu0 %v373
    %486 = vmatpush.bf16.msra.mxu0 %v372
    %487 = vmatpush.bf16.msra.mxu0 %v371
    %488 = vmatpush.bf16.msra.mxu0 %v370
    %489 = vmatmul.bf16.gmra.mxu0 %v145
    %v490 = vpop.f32.mrf.mxu0
    %v491 = vadd.f32 %v478, %v490
    %v492 = vpop.f32.mrf.mxu0
    %493 = vdwg.mxu0
    %494 = vmatpush.bf16.msra.mxu0 %v385
    %495 = vmatpush.bf16.msra.mxu0 %v384
    %496 = vmatpush.bf16.msra.mxu0 %v383
    %497 = vmatpush.bf16.msra.mxu0 %v382
    %498 = vmatpush.bf16.msra.mxu0 %v381
    %499 = vmatpush.bf16.msra.mxu0 %v380
    %500 = vmatpush.bf16.msra.mxu0 %v379
    %501 = vmatpush.bf16.msra.mxu0 %v378
    %502 = vmatmul.bf16.gmra.mxu0 %v146
    %v503 = vpop.f32.mrf.mxu0
    %v504 = vadd.f32 %v491, %v503
    %v505 = vpop.f32.mrf.mxu0
    %506 = vdwg.mxu0
    %507 = vmatpush.bf16.msra.mxu0 %v393
    %508 = vmatpush.bf16.msra.mxu0 %v392
    %509 = vmatpush.bf16.msra.mxu0 %v391
    %510 = vmatpush.bf16.msra.mxu0 %v390
    %511 = vmatpush.bf16.msra.mxu0 %v389
    %512 = vmatpush.bf16.msra.mxu0 %v388
    %513 = vmatpush.bf16.msra.mxu0 %v387
    %514 = vmatpush.bf16.msra.mxu0 %v386
    %515 = vmatmul.bf16.gmra.mxu0 %v147
    %v516 = vpop.f32.mrf.mxu0
    %v517 = vadd.f32 %v504, %v516
    %v518 = vpop.f32.mrf.mxu0
    %519 = vdwg.mxu0
    %v520 = vlaneseq
    %v521 = vand.u32 %v520, 127
    %vm522 = vcmp.ge.s32.totalorder %v521, 40
    %vm523 = vcmp.lt.s32.totalorder %v521, 72
    %vm524 = vmand %vm522, %vm523
    %v525 = vxor.u32 %v517, 2147483648
    %v526 = vmul.f32 %v525, 1.442695
    %v527 = vpow.pop %v526
    %v528 = vadd.f32 %v527, 1.0
    %v529 = vrcp.pop %v528
    %v530 = vmul.f32 %v528, %v529
    %v531 = vsub.f32 1.0, %v530
    %v532 = vmul.f32 %v529, %v531
    %v533 = vadd.f32 %v529, %v532
    %vm534 = vweird.f32 %v528
    %vm535 = vweird.f32 %v529
    %vm536 = vmor %vm534, %vm535
    %v537 = vsel %vm536, %v529, %v533
    %v538 = vand.u32 2147483647, %v528
    %vm539 = vcmp.eq.f32.partialorder %v538, 8.507059e+37
    %v540 = vand.u32 %v528, 2147483648
    %v541 = vor.u32 1.1754944e-38, %v540
    %v542 = vsel %vm539, %v541, %v537
    %v543 = vmul.f32 1.0, %v542
    %v544 = vsel %vm524, %v543, %v517
    %545 = vst [vmem:[%s3] sm:$0xff] %v544
    // Predicated region
    $region18: #{base_model_forward.1} parent=1 // pred_check
      _
    $region19: #{base_model_forward.1} parent=1 // pred_check_branch
      %547 = sbr.rel (0) target = $region21
    $region20: #{base_model_forward.1} parent=1 // pred_region
      _
    $region21: #{base_model_forward.1} parent=1 // pred_fallthru
      _
    // Predicated region
    $region22: #{base_model_forward.1} parent=1 // pred_check
      _
    $region23: #{base_model_forward.1} parent=1 // pred_check_branch
      %549 = sbr.rel (0) target = $region25
    $region24: #{base_model_forward.1} parent=1 // pred_region
      _
    $region25: #{base_model_forward.1} parent=1 // pred_fallthru
      _
    %550 = vsyncpa [#allocation3], 1

</llo_original>
